<compile_context>
chip_gen: v7x
topology: tpu7x:2x2x1
jax: 0.10.0
libtpu: 0.0.40
codegen_flags: <defaults>
</compile_context>

<pallas_src>
import functools

import jax
import jax.numpy as jnp
from jax.experimental import pallas as pl
from jax.experimental.pallas import tpu as pltpu


# ---------------------------------------------------------------------------
# Kernels
# ---------------------------------------------------------------------------
def _masked_gap_kernel(x_ref, m_ref, o_ref, acc_ref, den_ref):
    # x_ref:   (TB, TT, TD)  input dtype (bf16/f32/...)
    # m_ref:   (TB, TT, 1)   float32
    # o_ref:   (TB, 1,  TD)  float32
    # acc_ref: (TB, 1,  TD)  float32 scratch (numerator accumulator)
    # den_ref: (TB, 1,  1)   float32 scratch (mask-count accumulator)
    t = pl.program_id(2)

    @pl.when(t == 0)
    def _init():
        acc_ref[...] = jnp.zeros_like(acc_ref)
        den_ref[...] = jnp.zeros_like(den_ref)

    x = x_ref[...].astype(jnp.float32)          # accumulate in f32
    m = m_ref[...]                               # (TB, TT, 1), broadcasts over D
    acc_ref[...] += jnp.sum(x * m, axis=1, keepdims=True)
    den_ref[...] += jnp.sum(m, axis=1, keepdims=True)

    @pl.when(t == pl.num_programs(2) - 1)
    def _finalize():
        # NOTE: an all-zero mask row yields inf/nan, matching the PyTorch module.
        inv = pl.reciprocal(den_ref[...], approx=False)
        o_ref[...] = (acc_ref[...] * inv).astype(o_ref.dtype)


def _gap_kernel(x_ref, o_ref, acc_ref, *, inv_seq_len):
    # x_ref: (TB, TT, TD); o_ref: (TB, 1, TD); acc_ref: (TB, 1, TD) f32
    t = pl.program_id(2)

    @pl.when(t == 0)
    def _init():
        acc_ref[...] = jnp.zeros_like(acc_ref)

    acc_ref[...] += jnp.sum(x_ref[...].astype(jnp.float32), axis=1, keepdims=True)

    @pl.when(t == pl.num_programs(2) - 1)
    def _finalize():
        o_ref[...] = (acc_ref[...] * inv_seq_len).astype(o_ref.dtype)


# ---------------------------------------------------------------------------
# Tiling heuristics
# ---------------------------------------------------------------------------
_X_BLOCK_BUDGET_BYTES = 4 * 1024 * 1024  # per x block; Pallas double-buffers it


def _largest_divisor_tile(dim, unit, cap):
    """Largest multiple of `unit` that divides `dim`, capped at `cap`.
    Falls back to the full dim if `dim` is not a multiple of `unit`."""
    if dim % unit != 0:
        return dim
    tile = unit
    k = unit
    while k <= min(dim, cap):
        if dim % k == 0:
            tile = k
        k += unit
    return tile


def _choose_tiles(B, T, D, itemsize):
    # Feature tile: multiple of 128 lanes (>=512 preferred for HBM roofline).
    TD = _largest_divisor_tile(D, 128, 1024)
    # Sequence tile: multiple of 128 (keeps every BlockSpec (8,128)-legal).
    TT = _largest_divisor_tile(T, 128, 512)
    # Batch tile: as many rows as the VMEM budget allows (amortizes the
    # ~0.35 us per-grid-step overhead).  TB is a leading dim, so any divisor
    # of B is legal.
    cap_b = max(1, _X_BLOCK_BUDGET_BYTES // max(1, TT * TD * itemsize))
    TB = _largest_divisor_tile(B, 1, min(cap_b, 128))
    return TB, TT, TD


# ---------------------------------------------------------------------------
# Wrapper
# ---------------------------------------------------------------------------
def masked_global_average_pooling_1d(inputs, mask=None):
    """inputs: (B, T, D) array (any float dtype); mask: optional (B, T)."""
    B, T, D = inputs.shape
    itemsize = jnp.dtype(inputs.dtype).itemsize
    TB, TT, TD = _choose_tiles(B, T, D, itemsize)
    grid = (B // TB, D // TD, T // TT)  # reduction axis (T) last

    x_spec = pl.BlockSpec((TB, TT, TD), lambda b, d, t: (b, t, d))
    out_spec = pl.BlockSpec((TB, 1, TD), lambda b, d, t: (b, 0, d))
    cparams = pltpu.CompilerParams(
        dimension_semantics=("parallel", "parallel", "arbitrary"),
        vmem_limit_bytes=32 * 1024 * 1024,
    )

    if mask is not None:
        # torch: mask.float().unsqueeze(-1).  The reshape is metadata-only; the
        # dense (B, T) mask stays contiguous in HBM.
        mask3 = mask.astype(jnp.float32).reshape(B, T, 1)
        m_spec = pl.BlockSpec((TB, TT, 1), lambda b, d, t: (b, t, 0))
        out = pl.pallas_call(
            _masked_gap_kernel,
            out_shape=jax.ShapeDtypeStruct((B, 1, D), jnp.float32),
            grid=grid,
            in_specs=[x_spec, m_spec],
            out_specs=out_spec,
            scratch_shapes=[
                pltpu.VMEM((TB, 1, TD), jnp.float32),
                pltpu.VMEM((TB, 1, 1), jnp.float32),
            ],
            compiler_params=cparams,
            cost_estimate=pl.CostEstimate(
                flops=2 * B * T * D,
                transcendentals=0,
                bytes_accessed=B * T * D * itemsize + B * T * 4 + B * D * 4,
            ),
        )(inputs, mask3)
        return out.reshape(B, D)
    else:
        kernel = functools.partial(_gap_kernel, inv_seq_len=float(1.0 / T))
        out = pl.pallas_call(
            kernel,
            out_shape=jax.ShapeDtypeStruct((B, 1, D), inputs.dtype),
            grid=grid,
            in_specs=[x_spec],
            out_specs=out_spec,
            scratch_shapes=[pltpu.VMEM((TB, 1, TD), jnp.float32)],
            compiler_params=cparams,
            cost_estimate=pl.CostEstimate(
                flops=B * T * D,
                transcendentals=0,
                bytes_accessed=B * T * D * itemsize + B * D * itemsize,
            ),
        )(inputs)
        return out.reshape(B, D)


# ---------------------------------------------------------------------------
# Self-test
# ---------------------------------------------------------------------------
if __name__ == "__main__":
    key = jax.random.PRNGKey(0)
    kx, km = jax.random.split(key)

    B, T, D = 2, 8, 32
    x = jax.random.normal(kx, (B, T, D), dtype=jnp.float32)
    # binary mask with at least one valid timestep per batch row
    mask = (jax.random.uniform(km, (B, T)) > 0.3).astype(jnp.float32)
    mask = mask.at[:, 0].set(1.0)

    # masked path (f32 input)
    out_masked = masked_global_average_pooling_1d(x, mask)
    jax.block_until_ready(out_masked)

    # unmasked path (f32 input)
    out_plain = masked_global_average_pooling_1d(x, None)
    jax.block_until_ready(out_plain)

    # masked path with a bf16 input (no wrapper upcast; f32 accumulation in-kernel)
    x_bf16 = x.astype(jnp.bfloat16)
    out_masked_bf16 = masked_global_average_pooling_1d(x_bf16, mask)
    jax.block_until_ready(out_masked_bf16)

    # references (plain JAX)
    ref_masked = jnp.sum(x * mask[:, :, None], axis=1) / jnp.sum(
        mask, axis=1, keepdims=True
    )
    ref_plain = jnp.mean(x, axis=1)
    x_bf16_f32 = x_bf16.astype(jnp.float32)
    ref_masked_bf16 = jnp.sum(x_bf16_f32 * mask[:, :, None], axis=1) / jnp.sum(
        mask, axis=1, keepdims=True
    )

    assert out_masked.shape == (B, D)
    assert out_plain.shape == (B, D)
    assert out_masked_bf16.shape == (B, D)
    assert jnp.allclose(out_masked, ref_masked, atol=1e-5, rtol=1e-5)
    assert jnp.allclose(out_plain, ref_plain, atol=1e-5, rtol=1e-5)
    assert jnp.allclose(out_masked_bf16, ref_masked_bf16, atol=1e-5, rtol=1e-5)

    print("KERNEL_OK")
</pallas_src>

<mosaic_0001>
module attributes {stable_mosaic.version = 11 : i64} {
  func.func @_masked_gap_kernel(%arg0: i32, %arg1: i32, %arg2: i32, %arg3: memref<2x8x32xf32, #tpu.memory_space<vmem>>, %arg4: memref<2x8x1xf32, #tpu.memory_space<vmem>>, %arg5: memref<2x1x32xf32, #tpu.memory_space<vmem>>, %arg6: memref<2x1x32xf32, #tpu.memory_space<vmem>>, %arg7: memref<2x1x1xf32, #tpu.memory_space<vmem>>) attributes {dimension_semantics = [#tpu.dimension_semantics<parallel>, #tpu.dimension_semantics<parallel>, #tpu.dimension_semantics<arbitrary>], iteration_bounds = array<i64: 1, 1, 1>, scalar_prefetch = 0 : i64, scratch_operands = 2 : i64, tpu.core_type = #tpu.core_type<tc>, window_params = [{transform_indices = @transform_0, window_bounds = array<i64: 2, 8, 32>}, {transform_indices = @transform_1, window_bounds = array<i64: 2, 8, 1>}, {transform_indices = @transform_2, window_bounds = array<i64: 2, 1, 32>}]} {
    %c0_i32 = arith.constant 0 : i32
    %0 = arith.cmpi eq, %arg2, %c0_i32 : i32
    %1 = arith.extui %0 : i1 to i32
    %c0_i32_0 = arith.constant 0 : i32
    %2 = arith.cmpi ne, %1, %c0_i32_0 : i32
    scf.if %2 {
      %cst_21 = arith.constant 0.000000e+00 : f32
      %20 = vector.broadcast %cst_21 : f32 to vector<2x1x32xf32>
      %c0_22 = arith.constant 0 : index
      %c0_23 = arith.constant 0 : index
      %c0_24 = arith.constant 0 : index
      %21 = vector.load %arg6[%c0_22, %c0_23, %c0_24] : memref<2x1x32xf32, #tpu.memory_space<vmem>>, vector<2x1x32xf32>
      tpu.vector_store %arg6[%c0_22, %c0_23, %c0_24], %20 {strides = array<i32>} : memref<2x1x32xf32, #tpu.memory_space<vmem>>, vector<2x1x32xf32>,
      %cst_25 = arith.constant 0.000000e+00 : f32
      %22 = vector.broadcast %cst_25 : f32 to vector<2x1x1xf32>
      %c0_26 = arith.constant 0 : index
      %c0_27 = arith.constant 0 : index
      %c0_28 = arith.constant 0 : index
      %23 = vector.load %arg7[%c0_26, %c0_27, %c0_28] : memref<2x1x1xf32, #tpu.memory_space<vmem>>, vector<2x1x1xf32>
      tpu.vector_store %arg7[%c0_26, %c0_27, %c0_28], %22 {strides = array<i32>} : memref<2x1x1xf32, #tpu.memory_space<vmem>>, vector<2x1x1xf32>,
    } else {
    }
    %c0 = arith.constant 0 : index
    %c0_1 = arith.constant 0 : index
    %c0_2 = arith.constant 0 : index
    %3 = vector.load %arg3[%c0, %c0_1, %c0_2] : memref<2x8x32xf32, #tpu.memory_space<vmem>>, vector<2x8x32xf32>
    %c0_3 = arith.constant 0 : index
    %c0_4 = arith.constant 0 : index
    %c0_5 = arith.constant 0 : index
    %4 = vector.load %arg4[%c0_3, %c0_4, %c0_5] : memref<2x8x1xf32, #tpu.memory_space<vmem>>, vector<2x8x1xf32>
    %c0_6 = arith.constant 0 : index
    %c0_7 = arith.constant 0 : index
    %c0_8 = arith.constant 0 : index
    %5 = vector.load %arg6[%c0_6, %c0_7, %c0_8] : memref<2x1x32xf32, #tpu.memory_space<vmem>>, vector<2x1x32xf32>
    %6 = vector.broadcast %4 : vector<2x8x1xf32> to vector<2x8x32xf32>
    %7 = arith.mulf %3, %6 : vector<2x8x32xf32>
    %cst = arith.constant dense<0.000000e+00> : vector<2x32xf32>
    %8 = vector.multi_reduction <add>, %7, %cst [1] : vector<2x8x32xf32> to vector<2x32xf32>
    %9 = vector.shape_cast %8 : vector<2x32xf32> to vector<2x1x32xf32>
    %10 = arith.addf %5, %9 : vector<2x1x32xf32>
    %c0_9 = arith.constant 0 : index
    %c0_10 = arith.constant 0 : index
    %c0_11 = arith.constant 0 : index
    %11 = vector.load %arg6[%c0_9, %c0_10, %c0_11] : memref<2x1x32xf32, #tpu.memory_space<vmem>>, vector<2x1x32xf32>
    tpu.vector_store %arg6[%c0_9, %c0_10, %c0_11], %10 {strides = array<i32>} : memref<2x1x32xf32, #tpu.memory_space<vmem>>, vector<2x1x32xf32>,
    %c0_12 = arith.constant 0 : index
    %c0_13 = arith.constant 0 : index
    %c0_14 = arith.constant 0 : index
    %12 = vector.load %arg7[%c0_12, %c0_13, %c0_14] : memref<2x1x1xf32, #tpu.memory_space<vmem>>, vector<2x1x1xf32>
    %cst_15 = arith.constant dense<0.000000e+00> : vector<2x1xf32>
    %13 = vector.multi_reduction <add>, %4, %cst_15 [1] : vector<2x8x1xf32> to vector<2x1xf32>
    %14 = vector.shape_cast %13 : vector<2x1xf32> to vector<2x1x1xf32>
    %15 = arith.addf %12, %14 : vector<2x1x1xf32>
    %c0_16 = arith.constant 0 : index
    %c0_17 = arith.constant 0 : index
    %c0_18 = arith.constant 0 : index
    %16 = vector.load %arg7[%c0_16, %c0_17, %c0_18] : memref<2x1x1xf32, #tpu.memory_space<vmem>>, vector<2x1x1xf32>
    tpu.vector_store %arg7[%c0_16, %c0_17, %c0_18], %15 {strides = array<i32>} : memref<2x1x1xf32, #tpu.memory_space<vmem>>, vector<2x1x1xf32>,
    %c0_i32_19 = arith.constant 0 : i32
    %17 = arith.cmpi eq, %arg2, %c0_i32_19 : i32
    %18 = arith.extui %17 : i1 to i32
    %c0_i32_20 = arith.constant 0 : i32
    %19 = arith.cmpi ne, %18, %c0_i32_20 : i32
    scf.if %19 {
      %c0_21 = arith.constant 0 : index
      %c0_22 = arith.constant 0 : index
      %c0_23 = arith.constant 0 : index
      %20 = vector.load %arg7[%c0_21, %c0_22, %c0_23] : memref<2x1x1xf32, #tpu.memory_space<vmem>>, vector<2x1x1xf32>
      %21 = tpu.reciprocal %20 : vector<2x1x1xf32> -> vector<2x1x1xf32>
      %c0_24 = arith.constant 0 : index
      %c0_25 = arith.constant 0 : index
      %c0_26 = arith.constant 0 : index
      %22 = vector.load %arg6[%c0_24, %c0_25, %c0_26] : memref<2x1x32xf32, #tpu.memory_space<vmem>>, vector<2x1x32xf32>
      %23 = vector.broadcast %21 : vector<2x1x1xf32> to vector<2x1x32xf32>
      %24 = arith.mulf %22, %23 : vector<2x1x32xf32>
      %c0_27 = arith.constant 0 : index
      %c0_28 = arith.constant 0 : index
      %c0_29 = arith.constant 0 : index
      %25 = vector.load %arg5[%c0_27, %c0_28, %c0_29] : memref<2x1x32xf32, #tpu.memory_space<vmem>>, vector<2x1x32xf32>
      tpu.vector_store %arg5[%c0_27, %c0_28, %c0_29], %24 {strides = array<i32>} : memref<2x1x32xf32, #tpu.memory_space<vmem>>, vector<2x1x32xf32>,
    } else {
    }
    return
  }
  func.func @transform_0(%arg0: i32, %arg1: i32, %arg2: i32) -> (i32, i32, i32) {
    %c0_i32 = arith.constant 0 : i32
    return %arg0, %arg2, %arg1 : i32, i32, i32
  }
  func.func @transform_1(%arg0: i32, %arg1: i32, %arg2: i32) -> (i32, i32, i32) {
    %c0_i32 = arith.constant 0 : i32
    %c0_i32_0 = arith.constant 0 : i32
    return %arg0, %arg2, %c0_i32 : i32, i32, i32
  }
  func.func @transform_2(%arg0: i32, %arg1: i32, %arg2: i32) -> (i32, i32, i32) {
    %c0_i32 = arith.constant 0 : i32
    %c0_i32_0 = arith.constant 0 : i32
    return %arg0, %c0_i32, %arg1 : i32, i32, i32
  }
}

</mosaic_0001>

<llo_original>
// kernel: tpu_custom_call.1
$region0: #{tpu_custom_call.1}
  #allocation0 [shape = 'u32[]', space=smem, size = 0x4, offset = 0x4, fixed_abs, tag = 'smem constant byte address 0x4 - core index']
  #allocation1 [shape = 'u32[144,128]{1,0:T(1,128)}', space=vmem, size = 0x12000, scoped, tag = 'internal scratch']
  #allocation2 [shape = 'f32[2,1,32]{2,1,0:T(1,128)}', space=vmem, size = 0x400, scoped, tag = 'scratch operand']
  #allocation3 [shape = 'f32[2,1,1]{2,1,0:T(1,128)}', space=vmem, size = 0x400, scoped, tag = 'scratch operand']
  %s0 = inlined_call_operand.vmem [shape: f32[2,8,32], index: 0, kind: input, shape index: {}]
  %s1 = inlined_call_operand.vmem [shape: f32[2,8,1], index: 1, kind: input, shape index: {}]
  %s2 = inlined_call_operand.hbm [shape: f32[2,1,32], index: 2, kind: output, shape index: {}]
  %s3 = sld [smem:[#allocation0]]
  $region26: #{tpu_custom_call.1} parent=0
    _
  %s5 = ssub.s32 1, %s3
  %s6 = scalar_select 0, %s5, %s3
  $region1: #{tpu_custom_call.1} parent=0
    #allocation4 [shape = 'u8[1024]{0}', space=vmem, size = 0x400, scoped, tag = 'output window, operand 0, single buffered']
    #allocation5 [shape = 's32[1]{0}', space=sflag, size = 0x4, scoped, tag = 'scoped memory for tpu_custom_call.1']
    %7 = vsyncpa [#allocation5], 0
    // Predicated region
    $region2: #{tpu_custom_call.1} parent=1 // pred_check
      _
    $region3: #{tpu_custom_call.1} parent=1 // pred_check_branch
      %9 = sbr.rel (0) target = $region5
    $region4: #{tpu_custom_call.1} parent=1 // pred_region
      _
    $region5: #{tpu_custom_call.1} parent=1 // pred_fallthru
      _
    // Predicated region
    $region6: #{tpu_custom_call.1} parent=1 // pred_check
      _
    $region7: #{tpu_custom_call.1} parent=1 // pred_check_branch
      %11 = sbr.rel (0) target = $region9
    $region8: #{tpu_custom_call.1} parent=1 // pred_region
      _
    $region9: #{tpu_custom_call.1} parent=1 // pred_fallthru
      _
    %p12 = scmp.eq.s32.totalorder 0, 0
    // Predicated region
    $region10: #{tpu_custom_call.1} parent=1 // pred_check
      %p13 = pneg %p12
    $region11: #{tpu_custom_call.1} parent=1 // pred_check_branch
      %15 = sbr.rel (%p13) target = $region13
    $region12: #{tpu_custom_call.1} parent=1 // pred_region
      %vm16 = vcmask 253952
      %17 = vst.msk [vmem:[#allocation2] sm:$0x1] %vm16, 0.0
      %18 = vst.msk [vmem:[#allocation2 + $0x1] sm:$0x1] %vm16, 0.0
      %vm19 = vcmask 0
      %20 = vst.msk [vmem:[#allocation3] sm:$0x1] %vm19, 0.0
      %21 = vst.msk [vmem:[#allocation3 + $0x1] sm:$0x1] %vm19, 0.0
    $region13: #{tpu_custom_call.1} parent=1 // pred_fallthru
      _
    %v22 = vld [vmem:[%s0] sm:$0xff]
    %v23 = vld [vmem:[%s0 + $0x8] sm:$0xff]
    %v24 = vld [vmem:[%s1] sm:$0xff]
    %v25 = vld [vmem:[%s1 + $0x8] sm:$0xff]
    %v26 = vld [vmem:[#allocation2] sm:$0x1]
    %v27 = vld [vmem:[#allocation2 + $0x1] sm:$0x1]
    %29 = vset.pattern.permute.xlu0 0
    %30 = vperm.xlu0 %29, %v24
    %v31 = vpop.permute.xlu0 %30
    %34 = vset.pattern.permute.xlu0 0
    %35 = vperm.xlu0 %34, %v25
    %v36 = vpop.permute.xlu0 %35
    %v38 = vmul.f32 %v22, %v31
    %v39 = vmul.f32 %v23, %v36
    %vm40 = vcmask 261120
    %v41 = vsel %vm40, %v38, 0.0
    %v42 = vrot.slane %v41, 4
    %v43 = vadd.f32 %v41, %v42
    %v44 = vrot.slane %v43, 2
    %v45 = vadd.f32 %v43, %v44
    %v46 = vrot.slane %v45, 1
    %v47 = vadd.f32 %v45, %v46
    %v48 = vsel %vm40, %v39, 0.0
    %v49 = vrot.slane %v48, 4
    %v50 = vadd.f32 %v48, %v49
    %v51 = vrot.slane %v50, 2
    %v52 = vadd.f32 %v50, %v51
    %v53 = vrot.slane %v52, 1
    %v54 = vadd.f32 %v52, %v53
    %v55 = vadd.f32 %v26, %v47
    %v56 = vadd.f32 %v27, %v54
    %vm57 = vcmask 253952
    %58 = vst.msk [vmem:[#allocation2] sm:$0x1] %vm57, %v55
    %59 = vst.msk [vmem:[#allocation2 + $0x1] sm:$0x1] %vm57, %v56
    %v60 = vld [vmem:[#allocation3] sm:$0x1]
    %v61 = vld [vmem:[#allocation3 + $0x1] sm:$0x1]
    %vm62 = vcmask 7168
    %v63 = vsel %vm62, %v24, 0.0
    %v64 = vrot.slane %v63, 4
    %v65 = vadd.f32 %v63, %v64
    %v66 = vrot.slane %v65, 2
    %v67 = vadd.f32 %v65, %v66
    %v68 = vrot.slane %v67, 1
    %v69 = vadd.f32 %v67, %v68
    %v70 = vsel %vm62, %v25, 0.0
    %v71 = vrot.slane %v70, 4
    %v72 = vadd.f32 %v70, %v71
    %v73 = vrot.slane %v72, 2
    %v74 = vadd.f32 %v72, %v73
    %v75 = vrot.slane %v74, 1
    %v76 = vadd.f32 %v74, %v75
    %v77 = vadd.f32 %v60, %v69
    %v78 = vadd.f32 %v61, %v76
    %vm79 = vcmask 0
    %80 = vst.msk [vmem:[#allocation3] sm:$0x1] %vm79, %v77
    %81 = vst.msk [vmem:[#allocation3 + $0x1] sm:$0x1] %vm79, %v78
    // Predicated region
    $region14: #{tpu_custom_call.1} parent=1 // pred_check
      %p82 = pneg %p12
    $region15: #{tpu_custom_call.1} parent=1 // pred_check_branch
      %84 = sbr.rel (%p82) target = $region17
    $region16: #{tpu_custom_call.1} parent=1 // pred_region
      %v85 = vld [vmem:[#allocation3] sm:$0x1]
      %v86 = vld [vmem:[#allocation3 + $0x1] sm:$0x1]
      %v87 = vrcp.pop %v85
      %v88 = vrcp.pop %v86
      %v89 = vld [vmem:[#allocation2] sm:$0x1]
      %v90 = vld [vmem:[#allocation2 + $0x1] sm:$0x1]
      %92 = vset.pattern.permute.xlu0 0
      %93 = vperm.xlu0 %92, %v87
      %v94 = vpop.permute.xlu0 %93
      %v96 = vlaneseq
      %v97 = vshrl.u32 %v96, 7
      %v98 = vsub.s32 0, %v97
      %v99 = vrot.slane %v94, %v98
      %101 = vset.pattern.permute.xlu0 0
      %102 = vperm.xlu0 %101, %v88
      %v103 = vpop.permute.xlu0 %102
      %v105 = vlaneseq
      %v106 = vshrl.u32 %v105, 7
      %v107 = vsub.s32 0, %v106
      %v108 = vrot.slane %v103, %v107
      %v109 = vmul.f32 %v89, %v99
      %v110 = vmul.f32 %v90, %v108
      %111 = vst.msk [vmem:[#allocation4] sm:$0x1] %vm57, %v109
      %112 = vst.msk [vmem:[#allocation4 + $0x1] sm:$0x1] %vm57, %v110
    $region17: #{tpu_custom_call.1} parent=1 // pred_fallthru
      _
    // Predicated region
    $region18: #{tpu_custom_call.1} parent=1 // pred_check
      _
    $region19: #{tpu_custom_call.1} parent=1 // pred_check_branch
      %114 = sbr.rel (0) target = $region21
    $region20: #{tpu_custom_call.1} parent=1 // pred_region
      %s116 = ssub.s32 32, 32
      %117 = vsyncadd [#allocation5], %s116
      %s118 = sshll.u32 [#allocation4], 4
      %s119 = int_to_ptr.vmem [resolvable:$true] %s118
      %124 = dma.vmem_to_hbm [thread:$0]  %s119, 32, %s2, [#allocation5], 16, 16, 1
    $region21: #{tpu_custom_call.1} parent=1 // pred_fallthru
      _
    // Predicated region
    $region22: #{tpu_custom_call.1} parent=1 // pred_check
      _
    $region23: #{tpu_custom_call.1} parent=1 // pred_check_branch
      %126 = sbr.rel (0) target = $region25
    $region24: #{tpu_custom_call.1} parent=1 // pred_region
      %127 = dma.done [#allocation5], 32
    $region25: #{tpu_custom_call.1} parent=1 // pred_fallthru
      _
    %128 = vsyncpa [#allocation5], 1

</llo_original>
